<compile_context>
chip_gen: v6e
topology: v6e:2x2x1
jax: 0.10.0
libtpu: 0.0.40
codegen_flags: <defaults>
</compile_context>

<pallas_src>
import functools

import jax
import jax.numpy as jnp
from jax.experimental import pallas as pl
from jax.experimental.pallas import tpu as pltpu


def _vdrop_kernel(bits_ref, x_ref, o_ref, *, threshold, inv_keep):
    # bits_ref: (1, H) uint32 — the same block is re-read for every T-tile of
    # this batch, so the mask is bit-identical ("locked") across the sequence.
    keep = bits_ref[...] < jnp.uint32(threshold)        # Bernoulli(keep_prob)
    mask = keep.astype(o_ref.dtype) * inv_keep          # inverted-dropout scale
    o_ref[...] = x_ref[...] * mask                      # (tT, H) * (1, H)


def _choose_tile_t(T, H, dtype, target_bytes=6 * 1024 * 1024):
    """Largest sublane-aligned T-tile with ~<= target_bytes of x per tile.

    No divisibility requirement: the grid uses pl.cdiv and the last tile may be
    ragged (boundary stores are masked by Pallas).
    """
    itemsize = jnp.dtype(dtype).itemsize
    sub = {1: 32, 2: 16, 4: 8}.get(itemsize, 8)          # sublane packing per dtype
    max_rows = max(sub, target_bytes // max(1, H * itemsize))
    if T <= max_rows:
        return T                                         # full axis fits in one tile
    return (max_rows // sub) * sub


def variational_dropout(x, key, dropout=0.5, training=True, donate_x=False):
    """x: [B, T, H]. Returns x * mask with mask ~ Bernoulli(1-dropout)/(1-dropout),
    drawn once per (batch, hidden) entry and shared across the seq axis."""
    if not training or dropout == 0.0:
        return x
    keep_prob = 1.0 - dropout
    if keep_prob <= 0.0:
        # PyTorch bernoulli_(0) -> all-zero mask -> output is all zeros.
        return jnp.zeros_like(x)

    B, T, H = x.shape

    # Raw random bits: one uint32 per (batch, hidden) mask entry.
    bits = jax.random.bits(key, (B, 1, H), dtype=jnp.uint32)
    # Integer Bernoulli threshold. Clamping to 2^32-1 introduces a 2^-32 drop
    # probability when keep_prob == 1 (negligible; that path also early-outs above
    # when dropout == 0.0).
    threshold = min(int(round(keep_prob * (1 << 32))), (1 << 32) - 1)

    # Lane-dense last dim: pad H up to a multiple of 128 so stores are unmasked.
    H_pad = ((H + 127) // 128) * 128
    if H_pad != H:
        x_in = jnp.pad(x, ((0, 0), (0, 0), (0, H_pad - H)))
        bits_in = jnp.pad(bits, ((0, 0), (0, 0), (0, H_pad - H)))
    else:
        x_in, bits_in = x, bits

    tT = _choose_tile_t(T, H_pad, x.dtype)
    kernel = functools.partial(
        _vdrop_kernel, threshold=threshold, inv_keep=1.0 / keep_prob)

    out = pl.pallas_call(
        kernel,
        out_shape=jax.ShapeDtypeStruct((B, T, H_pad), x.dtype),
        grid=(B, pl.cdiv(T, tT)),
        in_specs=[
            # Per-batch mask bits; same (1, H_pad) block for every T-tile of
            # batch b -> mask locked across the sequence.
            pl.BlockSpec((None, 1, H_pad), lambda b, t: (b, 0, 0)),
            # x tile: batch dim squeezed, kernel sees (tT, H_pad).
            pl.BlockSpec((None, tT, H_pad), lambda b, t: (b, t, 0)),
        ],
        out_specs=pl.BlockSpec((None, tT, H_pad), lambda b, t: (b, t, 0)),
        compiler_params=pltpu.CompilerParams(
            # Every output tile is written exactly once -> both axes parallel,
            # so v7x's 2 TCs shard T even when B is small. Neutral on v5e/v6e.
            dimension_semantics=("parallel", "parallel"),
            # 2 streams x 2 buffers x ~6 MiB tiles ~= 24 MiB; 40 MiB scoped
            # limit leaves headroom under v7x's 64 MiB physical VMEM.
            vmem_limit_bytes=40 * 1024 * 1024,
        ),
        # Dropout is a pure elementwise overwrite: aliasing x (input index 1)
        # to the output halves the HBM footprint when the caller donates x.
        input_output_aliases=({1: 0} if (donate_x and H_pad == H) else {}),
    )(bits_in, x_in)

    if H_pad != H:
        out = out[:, :, :H]
    return out


if __name__ == "__main__":
    root = jax.random.PRNGKey(0)
    kx, kmask = jax.random.split(root)

    B, T, H = 2, 16, 128
    x = jax.random.normal(kx, (B, T, H), dtype=jnp.float32)
    dropout = 0.5

    out = variational_dropout(x, kmask, dropout=dropout, training=True)
    out = jax.block_until_ready(out)
    assert out.shape == x.shape

    # Pure-JAX reference using the same bits the wrapper drew.
    keep_prob = 1.0 - dropout
    bits = jax.random.bits(kmask, (B, 1, H), dtype=jnp.uint32)
    threshold = jnp.uint32(min(int(round(keep_prob * (1 << 32))), (1 << 32) - 1))
    mask_ref = (bits < threshold).astype(x.dtype) / keep_prob     # (B, 1, H)
    expected = x * mask_ref
    assert bool(jnp.allclose(out, expected, atol=1e-6, rtol=1e-6))

    # Mask is locked across the seq axis: same drop pattern in every row of a batch.
    zeros = (out == 0.0)
    assert bool(jnp.all(zeros == zeros[:, :1, :]))

    # Eval mode is a passthrough; dropout=1.0 is all zeros (matches PyTorch).
    out_eval = variational_dropout(x, kmask, dropout=dropout, training=False)
    assert bool(jnp.array_equal(out_eval, x))
    out_all = variational_dropout(x, kmask, dropout=1.0, training=True)
    assert bool(jnp.all(out_all == 0.0))

    # Ragged-T path (T not a multiple of the tile / sublane count) still correct.
    T2 = 13
    x2 = jax.random.normal(kx, (B, T2, H), dtype=jnp.float32)
    out2 = jax.block_until_ready(
        variational_dropout(x2, kmask, dropout=dropout, training=True))
    assert bool(jnp.allclose(out2, x2 * mask_ref, atol=1e-6, rtol=1e-6))

    print("KERNEL_OK")
</pallas_src>

<mosaic_0001>
module attributes {stable_mosaic.version = 11 : i64} {
  func.func @_vdrop_kernel(%arg0: i32, %arg1: i32, %arg2: memref<1x1x128xi32, #tpu.memory_space<vmem>>, %arg3: memref<1x16x128xf32, #tpu.memory_space<vmem>>, %arg4: memref<1x16x128xf32, #tpu.memory_space<vmem>>) attributes {dimension_semantics = [#tpu.dimension_semantics<parallel>, #tpu.dimension_semantics<parallel>], iteration_bounds = array<i64: 2, 1>, scalar_prefetch = 0 : i64, scratch_operands = 0 : i64, tpu.core_type = #tpu.core_type<tc>, window_params = [{transform_indices = @transform_0, window_bounds = array<i64: 1, 1, 128>}, {transform_indices = @transform_1, window_bounds = array<i64: 1, 16, 128>}, {transform_indices = @transform_2, window_bounds = array<i64: 1, 16, 128>}]} {
    %c0 = arith.constant 0 : index
    %c0_0 = arith.constant 0 : index
    %c0_1 = arith.constant 0 : index
    %0 = vector.load %arg2[%c0, %c0_0, %c0_1] : memref<1x1x128xi32, #tpu.memory_space<vmem>>, vector<1x1x128xi32>
    %1 = vector.shape_cast %0 : vector<1x1x128xi32> to vector<1x128xi32>
    %c-2147483648_i32 = arith.constant -2147483648 : i32
    %2 = vector.broadcast %c-2147483648_i32 : i32 to vector<1x128xi32>
    %3 = arith.cmpi ult, %1, %2 : vector<1x128xi32>
    %4 = arith.extui %3 : vector<1x128xi1> to vector<1x128xi32>
    %5 = arith.sitofp %4 : vector<1x128xi32> to vector<1x128xf32>
    %cst = arith.constant 2.000000e+00 : f32
    %6 = vector.broadcast %cst : f32 to vector<1x128xf32>
    %7 = arith.mulf %5, %6 : vector<1x128xf32>
    %c0_2 = arith.constant 0 : index
    %c0_3 = arith.constant 0 : index
    %c0_4 = arith.constant 0 : index
    %8 = vector.load %arg3[%c0_2, %c0_3, %c0_4] : memref<1x16x128xf32, #tpu.memory_space<vmem>>, vector<1x16x128xf32>
    %9 = vector.shape_cast %8 : vector<1x16x128xf32> to vector<16x128xf32>
    %10 = vector.broadcast %7 : vector<1x128xf32> to vector<16x128xf32>
    %11 = arith.mulf %9, %10 : vector<16x128xf32>
    %c0_5 = arith.constant 0 : index
    %c0_6 = arith.constant 0 : index
    %c0_7 = arith.constant 0 : index
    %12 = vector.load %arg4[%c0_5, %c0_6, %c0_7] : memref<1x16x128xf32, #tpu.memory_space<vmem>>, vector<1x16x128xf32>
    %13 = vector.shape_cast %12 : vector<1x16x128xf32> to vector<16x128xf32>
    %14 = vector.shape_cast %11 : vector<16x128xf32> to vector<1x16x128xf32>
    tpu.vector_store %arg4[%c0_5, %c0_6, %c0_7], %14 {strides = array<i32>} : memref<1x16x128xf32, #tpu.memory_space<vmem>>, vector<1x16x128xf32>,
    return
  }
  func.func @transform_0(%arg0: i32, %arg1: i32) -> (i32, i32, i32) {
    %c0_i32 = arith.constant 0 : i32
    %c0_i32_0 = arith.constant 0 : i32
    %c0_i32_1 = arith.constant 0 : i32
    return %arg0, %c0_i32, %c0_i32_0 : i32, i32, i32
  }
  func.func @transform_1(%arg0: i32, %arg1: i32) -> (i32, i32, i32) {
    %c0_i32 = arith.constant 0 : i32
    %c0_i32_0 = arith.constant 0 : i32
    return %arg0, %arg1, %c0_i32 : i32, i32, i32
  }
  func.func @transform_2(%arg0: i32, %arg1: i32) -> (i32, i32, i32) {
    %c0_i32 = arith.constant 0 : i32
    %c0_i32_0 = arith.constant 0 : i32
    return %arg0, %arg1, %c0_i32 : i32, i32, i32
  }
}

</mosaic_0001>

<llo_original>
// kernel: tpu_custom_call.1
$region0: #{tpu_custom_call.1}
  #allocation0 [shape = 'u32[]', space=smem, size = 0x4, offset = 0x4, fixed_abs, tag = 'smem constant byte address 0x4 - core index']
  #allocation1 [shape = 'u32[144,128]{1,0:T(1,128)}', space=vmem, size = 0x12000, scoped, tag = 'internal scratch']
  %s0 = inlined_call_operand.hbm [shape: u32[2,1,128], index: 0, kind: input, shape index: {}]
  %s1 = inlined_call_operand.hbm [shape: f32[2,16,128], index: 1, kind: input, shape index: {}]
  %s2 = inlined_call_operand.hbm [shape: f32[2,16,128], index: 2, kind: output, shape index: {}]
  %s3 = sld [smem:[#allocation0]]
  $region49: #{tpu_custom_call.1} parent=0
    _
  %s5 = ssub.s32 1, %s3
  %s6 = scalar_select 0, %s5, %s3
  $region1: #{tpu_custom_call.1} parent=0
    #allocation2 [shape = 'u8[1024]{0}', space=vmem, size = 0x400, scoped, tag = 'input window, operand 0']
    #allocation3 [shape = 's32[2]{0}', space=sflag, size = 0x8, scoped, tag = 'scoped memory for tpu_custom_call.1']
    #allocation4 [shape = 's32[2]{0}', space=sflag, size = 0x8, scoped, tag = 'scoped memory for tpu_custom_call.1']
    #allocation5 [shape = 'u8[16384]{0}', space=vmem, size = 0x4000, scoped, tag = 'input window, operand 1']
    #allocation6 [shape = 's32[2]{0}', space=sflag, size = 0x8, scoped, tag = 'scoped memory for tpu_custom_call.1']
    #allocation7 [shape = 'u8[16384]{0}', space=vmem, size = 0x4000, scoped, tag = 'output window, operand 0']
    %7 = vsyncpa [#allocation3], 0
    %s8 = scalar_lea.sflag [#allocation3], 1
    %9 = vsyncpa %s8, 0
    %10 = vsyncpa [#allocation6], 0
    %s11 = scalar_lea.sflag [#allocation6], 1
    %12 = vsyncpa %s11, 0
    %13 = vsyncpa [#allocation4], 0
    %s14 = scalar_lea.sflag [#allocation4], 1
    %15 = vsyncpa %s14, 0
    loop: start=0, step=1, limit=4
    $region2: #{tpu_custom_call.1} parent=1 // loop_pre_header
      _
    $region3: #{tpu_custom_call.1} parent=1 // loop_header
      %s17 = sphi 0, %s21
      %p18 = scmp.ge.s32.totalorder %s17, 4
      %s24 = sphi 0, %s36
      %s25 = sphi 0, %s32
      %s26 = sphi 0, %s24
      %s27 = sphi 0, %s25
      %s28 = sphi 0, %s26
      %s29 = sphi 0, %s27
      %s39 = sphi 0, %s41
      %s42 = sphi 0, %s39
      %s43 = sphi 0, %s42
      %s59 = sphi 0, %s43
      %s67 = sphi 0, %s69
      %s70 = sphi 0, %s67
      %s71 = sphi 0, %s70
      %s87 = sphi 0, %s71
      %s95 = sphi 0, %s97
      %s98 = sphi 0, %s95
      %s99 = sphi 0, %s98
      %s115 = sphi 0, %s99
    $region4: #{tpu_custom_call.1} parent=1 // loop_header_branch
      %20 = sbr.rel (%p18) target = $region8
    $region5: #{tpu_custom_call.1} parent=1 // loop_body
      %s22 = ssub.s32 %s17, 1
      %s23 = ssub.s32 %s17, 2
      %s30 = sadd.s32 1, %s25
      %p31 = scmp.ge.s32.totalorder %s30, 1
      %s32 = scalar_select %p31, 0, %s30
      %s33 = sadd.s32 1, %s24
      %s34 = scalar_select %p31, %s33, %s24
      %p35 = scmp.ge.s32.totalorder %s34, 2
      %s36 = scalar_select %p35, 0, %s34
      %s37 = ssub.s32 %s24, %s36
      %p38 = scmp.eq.s32.totalorder %s37, 0
      %s40 = sadd.s32 %s39, 1
      %s41 = scalar_select %p38, %s39, %s40
      %p44 = pneg %p38
      %p45 = scmp.eq.s32.totalorder %s17, 1
      %p46 = por %p44, %p45
      %p47 = scmp.ne.s32.totalorder %s39, %s42
      %p48 = scmp.eq.s32.totalorder %s17, 0
      %p49 = por %p47, %p48
      %p50 = scmp.ne.s32.totalorder %s39, %s42
      %p51 = scmp.eq.s32.totalorder %s22, 1
      %p52 = por %p50, %p51
      %p53 = scmp.ne.s32.totalorder %s42, %s43
      %p54 = scmp.eq.s32.totalorder %s22, 0
      %p55 = por %p53, %p54
      %p56 = scmp.ne.s32.totalorder %s42, %s43
      %p57 = scmp.eq.s32.totalorder %s23, 1
      %p58 = por %p56, %p57
      %p60 = scmp.ne.s32.totalorder %s43, %s59
      %p61 = scmp.eq.s32.totalorder %s23, 0
      %p62 = por %p60, %p61
      %s63 = ssub.s32 %s24, %s36
      %s64 = ssub.s32 %s25, %s32
      %s65 = sor.u32 %s63, %s64
      %p66 = scmp.eq.s32.totalorder %s65, 0
      %s68 = sadd.s32 %s67, 1
      %s69 = scalar_select %p66, %s67, %s68
      %p72 = pneg %p66
      %p73 = scmp.eq.s32.totalorder %s17, 1
      %p74 = por %p72, %p73
      %p75 = scmp.ne.s32.totalorder %s67, %s70
      %p76 = scmp.eq.s32.totalorder %s17, 0
      %p77 = por %p75, %p76
      %p78 = scmp.ne.s32.totalorder %s67, %s70
      %p79 = scmp.eq.s32.totalorder %s22, 1
      %p80 = por %p78, %p79
      %p81 = scmp.ne.s32.totalorder %s70, %s71
      %p82 = scmp.eq.s32.totalorder %s22, 0
      %p83 = por %p81, %p82
      %p84 = scmp.ne.s32.totalorder %s70, %s71
      %p85 = scmp.eq.s32.totalorder %s23, 1
      %p86 = por %p84, %p85
      %p88 = scmp.ne.s32.totalorder %s71, %s87
      %p89 = scmp.eq.s32.totalorder %s23, 0
      %p90 = por %p88, %p89
      %s91 = ssub.s32 %s24, %s36
      %s92 = ssub.s32 %s25, %s32
      %s93 = sor.u32 %s91, %s92
      %p94 = scmp.eq.s32.totalorder %s93, 0
      %s96 = sadd.s32 %s95, 1
      %s97 = scalar_select %p94, %s95, %s96
      %p100 = pneg %p94
      %p101 = scmp.eq.s32.totalorder %s17, 1
      %p102 = por %p100, %p101
      %p103 = scmp.ne.s32.totalorder %s95, %s98
      %p104 = scmp.eq.s32.totalorder %s17, 0
      %p105 = por %p103, %p104
      %p106 = scmp.ne.s32.totalorder %s95, %s98
      %p107 = scmp.eq.s32.totalorder %s22, 1
      %p108 = por %p106, %p107
      %p109 = scmp.ne.s32.totalorder %s98, %s99
      %p110 = scmp.eq.s32.totalorder %s22, 0
      %p111 = por %p109, %p110
      %p112 = scmp.ne.s32.totalorder %s98, %s99
      %p113 = scmp.eq.s32.totalorder %s23, 1
      %p114 = por %p112, %p113
      %p116 = scmp.ne.s32.totalorder %s99, %s115
      %p117 = scmp.eq.s32.totalorder %s23, 0
      %p118 = por %p116, %p117
      %p119 = scmp.le.s32.totalorder 1, %s17
      %p120 = scmp.lt.s32.totalorder %s17, 3
      %p121 = pnand %p119, %p120
      %p122 = pneg %p121
      // Predicated region
      $region9: #{tpu_custom_call.1} parent=5 // pred_check
        _
      $region10: #{tpu_custom_call.1} parent=5 // pred_check_branch
        %124 = sbr.rel (%p121) target = $region12
      $region11: #{tpu_custom_call.1} parent=5 // pred_region
        %s125 = ssub.s32 %s17, 1
      $region12: #{tpu_custom_call.1} parent=5 // pred_fallthru
        _
      %p126 = scmp.lt.s32.totalorder %s17, 2
      // Predicated region
      $region13: #{tpu_custom_call.1} parent=5 // pred_check
        %p127 = pneg %p126
      $region14: #{tpu_custom_call.1} parent=5 // pred_check_branch
        %129 = sbr.rel (%p127) target = $region16
      $region15: #{tpu_custom_call.1} parent=5 // pred_region
        // Predicated region
        $region17: #{tpu_custom_call.1} parent=15 // pred_check
          %p130 = pneg %p49
        $region18: #{tpu_custom_call.1} parent=15 // pred_check_branch
          %132 = sbr.rel (%p130) target = $region20
        $region19: #{tpu_custom_call.1} parent=15 // pred_region
          %s133 = sand.u32 %s39, 1
          %s134 = scalar_lea.sflag [#allocation3], %s133
          %s135 = sand.u32 %s39, 1
          %s136 = scalar_lea.vmem [#allocation2], %s135
          %s138 = ssub.s32 16, 16
          %139 = vsyncadd %s134, %s138
          %s140 = smul.addr %s24, 16
          %s141 = scalar_lea.hbm %s0, %s140
          %s143 = sshll.u32 %s136, 4
          %s144 = int_to_ptr.vmem [resolvable:$true] %s143
          %146 = dma.hbm_to_vmem [thread:$0]  %s141, 16, %s144, %s134
        $region20: #{tpu_custom_call.1} parent=15 // pred_fallthru
          _
        // Predicated region
        $region21: #{tpu_custom_call.1} parent=15 // pred_check
          %p147 = pneg %p77
        $region22: #{tpu_custom_call.1} parent=15 // pred_check_branch
          %149 = sbr.rel (%p147) target = $region24
        $region23: #{tpu_custom_call.1} parent=15 // pred_region
          %s150 = sand.u32 %s67, 1
          %s151 = scalar_lea.sflag [#allocation6], %s150
          %s152 = sand.u32 %s67, 1
          %s153 = smul.addr %s152, 16
          %s154 = scalar_lea.vmem [#allocation5], %s153
          %s155 = smul.u32 2, %s25
          %s157 = ssub.s32 256, 256
          %158 = vsyncadd %s151, %s157
          %s159 = smul.addr %s24, 2
          %s160 = sadd.s32 %s155, %s159
          %s161 = smul.addr %s160, 128
          %s162 = scalar_lea.hbm %s1, %s161
          %s163 = sshll.u32 %s154, 4
          %s164 = int_to_ptr.vmem [resolvable:$true] %s163
          %169 = dma.hbm_to_vmem [thread:$0]  %s162, 256, %s164, %s151, 128, 128, 8
        $region24: #{tpu_custom_call.1} parent=15 // pred_fallthru
          _
      $region16: #{tpu_custom_call.1} parent=5 // pred_fallthru
        _
      %p170 = scmp.le.s32.totalorder 1, %s17
      %p171 = scmp.lt.s32.totalorder %s17, 3
      %p172 = pnand %p170, %p171
      %p173 = pneg %p172
      // Predicated region
      $region25: #{tpu_custom_call.1} parent=5 // pred_check
        _
      $region26: #{tpu_custom_call.1} parent=5 // pred_check_branch
        %175 = sbr.rel (%p172) target = $region28
      $region27: #{tpu_custom_call.1} parent=5 // pred_region
        %s176 = ssub.s32 %s17, 1
        %s177 = sand.u32 %s42, 1
        %s178 = scalar_lea.sflag [#allocation3], %s177
        %s179 = sand.u32 %s42, 1
        %s180 = scalar_lea.vmem [#allocation2], %s179
        // Predicated region
        $region29: #{tpu_custom_call.1} parent=27 // pred_check
          %p181 = pneg %p55
        $region30: #{tpu_custom_call.1} parent=27 // pred_check_branch
          %183 = sbr.rel (%p181) target = $region32
        $region31: #{tpu_custom_call.1} parent=27 // pred_region
          %184 = dma.done %s178, 16
        $region32: #{tpu_custom_call.1} parent=27 // pred_fallthru
          _
        %s185 = sand.u32 %s70, 1
        %s186 = scalar_lea.sflag [#allocation6], %s185
        %s187 = sand.u32 %s70, 1
        %s188 = smul.addr %s187, 16
        %s189 = scalar_lea.vmem [#allocation5], %s188
        // Predicated region
        $region33: #{tpu_custom_call.1} parent=27 // pred_check
          %p190 = pneg %p83
        $region34: #{tpu_custom_call.1} parent=27 // pred_check_branch
          %192 = sbr.rel (%p190) target = $region36
        $region35: #{tpu_custom_call.1} parent=27 // pred_region
          %193 = dma.done %s186, 256
        $region36: #{tpu_custom_call.1} parent=27 // pred_fallthru
          _
        %s194 = sand.u32 %s42, 1
        %s195 = scalar_lea.sflag [#allocation3], %s194
        %s196 = sand.u32 %s42, 1
        %s197 = scalar_lea.vmem [#allocation2], %s196
        %p198 = pneg %p55
        %p199 = pneg %p52
        %s200 = sand.u32 %s70, 1
        %s201 = scalar_lea.sflag [#allocation6], %s200
        %s202 = sand.u32 %s70, 1
        %s203 = smul.addr %s202, 16
        %s204 = scalar_lea.vmem [#allocation5], %s203
        %p205 = pneg %p83
        %p206 = pneg %p80
        %p207 = pneg %p111
        %p208 = pneg %p108
        %s209 = sand.u32 %s98, 1
        %s210 = scalar_lea.sflag [#allocation4], %s209
        %s211 = sand.u32 %s98, 1
        %s212 = smul.addr %s211, 16
        %s213 = scalar_lea.vmem [#allocation7], %s212
        %s214 = smul.u32 2, %s27
        %s215 = smul.u32 2, %s27
        %v216 = vld [vmem:[%s180] sm:$0x1]
        %vm217 = vcmp.lt.u32.totalorder %v216, 2147483648
        %v218 = vsel %vm217, 1, 0
        %v219 = vcvt.s32.f32 %v218
        %v220 = vmul.f32 %v219, 2.0
        %v221 = vld [vmem:[%s189] sm:$0xff]
        %v222 = vld [vmem:[%s189 + $0x8] sm:$0xff]
        %v224 = vlaneseq
        %v225 = vshrl.u32 %v224, 7
        %v226 = vsub.s32 0, %v225
        %v227 = vrot.slane %v220, %v226
        %v229 = vmul.f32 %v221, %v227
        %v230 = vmul.f32 %v222, %v227
        %231 = vst [vmem:[%s213] sm:$0xff] %v229
        %232 = vst [vmem:[%s213 + $0x8] sm:$0xff] %v230
        %s233 = sand.u32 %s98, 1
        %s234 = scalar_lea.sflag [#allocation4], %s233
        %s235 = sand.u32 %s98, 1
        %s236 = smul.addr %s235, 16
        %s237 = scalar_lea.vmem [#allocation7], %s236
        // Predicated region
        $region37: #{tpu_custom_call.1} parent=27 // pred_check
          %p238 = pneg %p108
        $region38: #{tpu_custom_call.1} parent=27 // pred_check_branch
          %240 = sbr.rel (%p238) target = $region40
        $region39: #{tpu_custom_call.1} parent=27 // pred_region
          %s241 = smul.u32 2, %s27
          %s243 = ssub.s32 256, 256
          %244 = vsyncadd %s234, %s243
          %s245 = smul.addr %s26, 2
          %s246 = sadd.s32 %s241, %s245
          %s247 = smul.addr %s246, 128
          %s248 = scalar_lea.hbm %s2, %s247
          %s249 = sshll.u32 %s237, 4
          %s250 = int_to_ptr.vmem [resolvable:$true] %s249
          %255 = dma.vmem_to_hbm [thread:$0]  %s250, 256, %s248, %s234, 128, 128, 8
        $region40: #{tpu_custom_call.1} parent=27 // pred_fallthru
          _
      $region28: #{tpu_custom_call.1} parent=5 // pred_fallthru
        _
      %p256 = scmp.le.s32.totalorder 2, %s17
      // Predicated region
      $region41: #{tpu_custom_call.1} parent=5 // pred_check
        %p257 = pneg %p256
      $region42: #{tpu_custom_call.1} parent=5 // pred_check_branch
        %259 = sbr.rel (%p257) target = $region44
      $region43: #{tpu_custom_call.1} parent=5 // pred_region
        %s260 = ssub.s32 %s17, 2
        // Predicated region
        $region45: #{tpu_custom_call.1} parent=43 // pred_check
          %p261 = pneg %p114
        $region46: #{tpu_custom_call.1} parent=43 // pred_check_branch
          %263 = sbr.rel (%p261) target = $region48
        $region47: #{tpu_custom_call.1} parent=43 // pred_region
          %s264 = sand.u32 %s99, 1
          %s265 = scalar_lea.sflag [#allocation4], %s264
          %s266 = sand.u32 %s99, 1
          %s267 = smul.addr %s266, 16
          %s268 = scalar_lea.vmem [#allocation7], %s267
          %269 = dma.done %s265, 256
        $region48: #{tpu_custom_call.1} parent=43 // pred_fallthru
          _
      $region44: #{tpu_custom_call.1} parent=5 // pred_fallthru
        _
    $region6: #{tpu_custom_call.1} parent=1 // loop_footer
      %s21 = sadd.s32 1, %s17
    $region7: #{tpu_custom_call.1} parent=1 // loop_footer_branch
      %16 = sbr.rel target = $region3
    $region8: #{tpu_custom_call.1} parent=1 // loop_exit
      _
    %270 = vsyncpa [#allocation3], 1
    %s271 = scalar_lea.sflag [#allocation3], 1
    %272 = vsyncpa %s271, 1
    %273 = vsyncpa [#allocation6], 1
    %s274 = scalar_lea.sflag [#allocation6], 1
    %275 = vsyncpa %s274, 1
    %276 = vsyncpa [#allocation4], 1
    %s277 = scalar_lea.sflag [#allocation4], 1
    %278 = vsyncpa %s277, 1

</llo_original>
